<compile_context>
chip_gen: v6e
topology: v6e:2x2x1
jax: 0.10.0
libtpu: 0.0.40
codegen_flags: <defaults>
</compile_context>

<pallas_src>
import jax
import jax.numpy as jnp
from jax.experimental import pallas as pl
from jax.experimental.pallas import tpu as pltpu

INT_BITWIDTH = 8          # matches nn.Parameter(torch.tensor(bitwidth), requires_grad=False)
ALWAYS_POS = False        # module default
IS_ON = True              # enable quantization so the kernel does real work

_NUM_STEPS = 2 ** INT_BITWIDTH - 2          # 254
_CLAMP_LO = float((-_NUM_STEPS) // 2)       # -127.0  (matches torch -num_steps // 2)
_CLAMP_HI = float(_NUM_STEPS // 2)          # 127.0

_COLS = 1024              # lane-dense last dim (8 * 128) -> unmasked vst stores
_BLOCK_ROWS = 512         # 512 x 1024 x 4B = 2 MiB per buffer for large tensors


def _quantizer_kernel(scalars_ref, x_ref, o_ref):
    # scalars_ref (SMEM): [inv_stepsize, stepsize, off] precomputed in wrapper.
    inv_step = scalars_ref[0]
    step = scalars_ref[1]
    off = scalars_ref[2]

    x = x_ref[...]
    scaled = (x - off) * inv_step          # multiply by exact scalar reciprocal (no vector divide)
    rounded = jnp.round(scaled)            # roundpass forward == round (half-to-even, matches torch)
    clamped = jnp.clip(rounded, _CLAMP_LO, _CLAMP_HI)
    o_ref[...] = clamped * step + off


def quantizer_forward(x, alpha_baseline, alpha_delta):
    """Forward of Quantizer. x: float32 array (e.g. NCHW activations)."""
    if not IS_ON:
        return x

    orig_shape = x.shape
    n = x.size

    # ---- scalar parameter math hoisted out of the kernel (computed once) ----
    alpha = jnp.maximum(alpha_baseline + alpha_delta, jnp.float32(0.0))        # F.relu
    stepsize = 2.0 * alpha / jnp.float32(_NUM_STEPS)
    # NOTE: if alpha == 0 (module defaults), stepsize == 0 and the reference
    # PyTorch module already produces inf/nan; we mirror that behavior exactly.
    inv_stepsize = 1.0 / stepsize                                              # exact reciprocal
    off = alpha if ALWAYS_POS else jnp.float32(0.0)
    scalars = jnp.stack([inv_stepsize, stepsize, off]).astype(jnp.float32)

    # ---- layout: pad + reshape flat elements into a lane-dense (rows, 1024) slab ----
    flat = x.reshape(-1)
    rows = pl.cdiv(n, _COLS)
    if rows > _BLOCK_ROWS:
        block_rows = _BLOCK_ROWS
        rows_padded = pl.cdiv(rows, _BLOCK_ROWS) * _BLOCK_ROWS
    else:
        block_rows = rows                 # block covers full row extent (no (8,128) issue)
        rows_padded = rows
    pad = rows_padded * _COLS - n
    if pad:
        flat = jnp.pad(flat, (0, pad))
    x2d = flat.reshape(rows_padded, _COLS)

    grid = (rows_padded // block_rows,)
    out2d = pl.pallas_call(
        _quantizer_kernel,
        out_shape=jax.ShapeDtypeStruct((rows_padded, _COLS), x.dtype),
        grid=grid,
        in_specs=[
            pl.BlockSpec(memory_space=pltpu.MemorySpace.SMEM),             # precomputed scalars
            pl.BlockSpec((block_rows, _COLS), lambda i: (i, 0)),           # x tile (<= 2 MiB)
        ],
        out_specs=pl.BlockSpec((block_rows, _COLS), lambda i: (i, 0)),
        compiler_params=pltpu.CompilerParams(
            dimension_semantics=("parallel",),
            vmem_limit_bytes=32 * 1024 * 1024,   # ~8-10 MiB actually used; fits v7x/v6e/v5e
        ),
    )(scalars, x2d)

    return out2d.reshape(-1)[:n].reshape(orig_shape)


def quantizer_reference(x, alpha_baseline, alpha_delta):
    """Pure-JAX reference mirroring the PyTorch module (uses true divide)."""
    alpha = jnp.maximum(alpha_baseline + alpha_delta, 0.0)
    stepsize = 2.0 * alpha / _NUM_STEPS
    off = alpha if ALWAYS_POS else 0.0
    scaled = (x - off) / stepsize
    rounded = jnp.round(scaled)
    clamped = jnp.clip(rounded, _CLAMP_LO, _CLAMP_HI)
    return clamped * stepsize + off


if __name__ == "__main__":
    key = jax.random.PRNGKey(0)
    # NCHW activations, small shapes: batch=2, channels=4, spatial=16
    x = jax.random.normal(key, (2, 4, 16, 16), dtype=jnp.float32)

    # Deterministic scalar parameters (per module __init__ shapes).
    alpha_baseline = jnp.float32(0.0)
    alpha_delta = jnp.float32(1.0)   # nonzero so stepsize > 0 (module default 0.0 would div-by-zero)

    out = quantizer_forward(x, alpha_baseline, alpha_delta)
    out = jax.block_until_ready(out)

    ref = quantizer_reference(x, alpha_baseline, alpha_delta)
    assert out.shape == x.shape and out.dtype == x.dtype
    assert jnp.allclose(out, ref, atol=1e-5, rtol=1e-5), "mismatch vs reference"

    print("KERNEL_OK")
</pallas_src>

<mosaic_0001>
module attributes {stable_mosaic.version = 11 : i64} {
  func.func @_quantizer_kernel(%arg0: i32, %arg1: memref<3xf32, #tpu.memory_space<smem>>, %arg2: memref<2x1024xf32, #tpu.memory_space<vmem>>, %arg3: memref<2x1024xf32, #tpu.memory_space<vmem>>) attributes {dimension_semantics = [#tpu.dimension_semantics<parallel>], iteration_bounds = array<i64: 1>, scalar_prefetch = 0 : i64, scratch_operands = 0 : i64, tpu.core_type = #tpu.core_type<tc>, window_params = [{transform_indices = @transform_0, window_bounds = array<i64: 3>}, {transform_indices = @transform_1, window_bounds = array<i64: 2, 1024>}, {transform_indices = @transform_2, window_bounds = array<i64: 2, 1024>}]} {
    %c0 = arith.constant 0 : index
    %0 = memref.load %arg1[%c0] : memref<3xf32, #tpu.memory_space<smem>>
    %c1 = arith.constant 1 : index
    %1 = memref.load %arg1[%c1] : memref<3xf32, #tpu.memory_space<smem>>
    %c2 = arith.constant 2 : index
    %2 = memref.load %arg1[%c2] : memref<3xf32, #tpu.memory_space<smem>>
    %c0_0 = arith.constant 0 : index
    %c0_1 = arith.constant 0 : index
    %3 = vector.load %arg2[%c0_0, %c0_1] : memref<2x1024xf32, #tpu.memory_space<vmem>>, vector<2x1024xf32>
    %4 = vector.broadcast %2 : f32 to vector<2x1024xf32>
    %5 = arith.subf %3, %4 : vector<2x1024xf32>
    %6 = vector.broadcast %0 : f32 to vector<2x1024xf32>
    %7 = arith.mulf %5, %6 : vector<2x1024xf32>
    %8 = math.roundeven %7 : vector<2x1024xf32>
    %cst = arith.constant -1.270000e+02 : f32
    %cst_2 = arith.constant 1.270000e+02 : f32
    %9 = vector.broadcast %cst : f32 to vector<2x1024xf32>
    %10 = arith.maximumf %9, %8 : vector<2x1024xf32>
    %11 = vector.broadcast %cst_2 : f32 to vector<2x1024xf32>
    %12 = arith.minimumf %11, %10 : vector<2x1024xf32>
    %13 = vector.broadcast %1 : f32 to vector<2x1024xf32>
    %14 = arith.mulf %12, %13 : vector<2x1024xf32>
    %15 = vector.broadcast %2 : f32 to vector<2x1024xf32>
    %16 = arith.addf %14, %15 : vector<2x1024xf32>
    %c0_3 = arith.constant 0 : index
    %c0_4 = arith.constant 0 : index
    %17 = vector.load %arg3[%c0_3, %c0_4] : memref<2x1024xf32, #tpu.memory_space<vmem>>, vector<2x1024xf32>
    tpu.vector_store %arg3[%c0_3, %c0_4], %16 {strides = array<i32>} : memref<2x1024xf32, #tpu.memory_space<vmem>>, vector<2x1024xf32>,
    return
  }
  func.func @transform_0(%arg0: i32) -> i32 {
    %c0_i32 = arith.constant 0 : i32
    %c0_i32_0 = arith.constant 0 : i32
    return %c0_i32 : i32
  }
  func.func @transform_1(%arg0: i32) -> (i32, i32) {
    %c0_i32 = arith.constant 0 : i32
    %c0_i32_0 = arith.constant 0 : i32
    return %arg0, %c0_i32 : i32, i32
  }
  func.func @transform_2(%arg0: i32) -> (i32, i32) {
    %c0_i32 = arith.constant 0 : i32
    %c0_i32_0 = arith.constant 0 : i32
    return %arg0, %c0_i32 : i32, i32
  }
}

</mosaic_0001>

<llo_original>
// kernel: tpu_custom_call.1
$region0: #{tpu_custom_call.1}
  #allocation0 [shape = 'u32[]', space=smem, size = 0x4, offset = 0x4, fixed_abs, tag = 'smem constant byte address 0x4 - core index']
  #allocation1 [shape = 'u32[144,128]{1,0:T(1,128)}', space=vmem, size = 0x12000, scoped, tag = 'internal scratch']
  %s0 = inlined_call_operand.hbm [shape: f32[3], index: 0, kind: input, shape index: {}]
  %s1 = inlined_call_operand.hbm [shape: f32[2,1024], index: 1, kind: input, shape index: {}]
  %s2 = inlined_call_operand.hbm [shape: f32[2,1024], index: 2, kind: output, shape index: {}]
  %s3 = sld [smem:[#allocation0]]
  $region26: #{tpu_custom_call.1} parent=0
    _
  %s5 = ssub.s32 1, %s3
  %s6 = scalar_select 0, %s5, %s3
  $region1: #{tpu_custom_call.1} parent=0
    #allocation2 [shape = 'u8[512]{0}', space=smem, size = 0x200, scoped, tag = 'input window, operand 0, single buffered']
    #allocation3 [shape = 's32[1]{0}', space=sflag, size = 0x4, scoped, tag = 'scoped memory for tpu_custom_call.1']
    #allocation4 [shape = 's32[1]{0}', space=sflag, size = 0x4, scoped, tag = 'scoped memory for tpu_custom_call.1']
    #allocation5 [shape = 's32[1]{0}', space=sflag, size = 0x4, scoped, tag = 'scoped memory for tpu_custom_call.1']
    #allocation6 [shape = 'u8[8192]{0}', space=vmem, size = 0x2000, scoped, tag = 'input window, operand 1, single buffered']
    #allocation7 [shape = 'u8[8192]{0}', space=vmem, size = 0x2000, scoped, tag = 'output window, operand 0, single buffered']
    %7 = vsyncpa [#allocation5], 0
    %8 = vsyncpa [#allocation3], 0
    %9 = vsyncpa [#allocation4], 0
    // Predicated region
    $region2: #{tpu_custom_call.1} parent=1 // pred_check
      _
    $region3: #{tpu_custom_call.1} parent=1 // pred_check_branch
      %11 = sbr.rel (0) target = $region5
    $region4: #{tpu_custom_call.1} parent=1 // pred_region
      %s13 = ssub.s32 16, 16
      %14 = vsyncadd [#allocation5], %s13
      %17 = dma.hbm_to_smem %s0, 16, [#allocation2], [#allocation5]
    $region5: #{tpu_custom_call.1} parent=1 // pred_fallthru
      _
    // Predicated region
    $region6: #{tpu_custom_call.1} parent=1 // pred_check
      _
    $region7: #{tpu_custom_call.1} parent=1 // pred_check_branch
      %19 = sbr.rel (0) target = $region9
    $region8: #{tpu_custom_call.1} parent=1 // pred_region
      %s21 = ssub.s32 256, 256
      %22 = vsyncadd [#allocation3], %s21
      %s24 = sshll.u32 [#allocation6], 4
      %s25 = int_to_ptr.vmem [resolvable:$true] %s24
      %27 = dma.hbm_to_vmem [thread:$0]  %s1, 256, %s25, [#allocation3]
    $region9: #{tpu_custom_call.1} parent=1 // pred_fallthru
      _
    // Predicated region
    $region10: #{tpu_custom_call.1} parent=1 // pred_check
      _
    $region11: #{tpu_custom_call.1} parent=1 // pred_check_branch
      %29 = sbr.rel (0) target = $region13
    $region12: #{tpu_custom_call.1} parent=1 // pred_region
      %30 = dma.done [#allocation5], 16
    $region13: #{tpu_custom_call.1} parent=1 // pred_fallthru
      _
    // Predicated region
    $region14: #{tpu_custom_call.1} parent=1 // pred_check
      _
    $region15: #{tpu_custom_call.1} parent=1 // pred_check_branch
      %32 = sbr.rel (0) target = $region17
    $region16: #{tpu_custom_call.1} parent=1 // pred_region
      %33 = dma.done [#allocation3], 256
    $region17: #{tpu_custom_call.1} parent=1 // pred_fallthru
      _
    %34 = sfence
    %s35 = sld [smem:[#allocation2]]
    %s36 = sld [smem:[#allocation2 + $0x1]]
    %s37 = sld [smem:[#allocation2 + $0x2]]
    %v38 = vld [vmem:[#allocation6] sm:$0xff]
    %v39 = vld [vmem:[#allocation6 + $0x8] sm:$0xff]
    %v40 = vstv %s37
    %v41 = vsub.f32 %v38, %v40
    %v42 = vsub.f32 %v39, %v40
    %v43 = vstv %s35
    %v44 = vmul.f32 %v41, %v43
    %v45 = vmul.f32 %v42, %v43
    %v46 = vround.ne.pseudo %v44
    %v47 = vround.ne.pseudo %v45
    %v48 = vmax.f32 %v46, -127.0
    %v49 = vmax.f32 %v47, -127.0
    %v50 = vmin.f32 %v48, 127.0
    %v51 = vmin.f32 %v49, 127.0
    %v52 = vstv %s36
    %v53 = vmul.f32 %v50, %v52
    %v54 = vmul.f32 %v51, %v52
    %v55 = vadd.f32 %v53, %v40
    %v56 = vadd.f32 %v54, %v40
    %57 = vst [vmem:[#allocation7] sm:$0xff] %v55
    %58 = vst [vmem:[#allocation7 + $0x8] sm:$0xff] %v56
    // Predicated region
    $region18: #{tpu_custom_call.1} parent=1 // pred_check
      _
    $region19: #{tpu_custom_call.1} parent=1 // pred_check_branch
      %60 = sbr.rel (0) target = $region21
    $region20: #{tpu_custom_call.1} parent=1 // pred_region
      %s62 = ssub.s32 256, 256
      %63 = vsyncadd [#allocation4], %s62
      %s65 = sshll.u32 [#allocation7], 4
      %s66 = int_to_ptr.vmem [resolvable:$true] %s65
      %68 = dma.vmem_to_hbm [thread:$0]  %s66, 256, %s2, [#allocation4]
    $region21: #{tpu_custom_call.1} parent=1 // pred_fallthru
      _
    // Predicated region
    $region22: #{tpu_custom_call.1} parent=1 // pred_check
      _
    $region23: #{tpu_custom_call.1} parent=1 // pred_check_branch
      %70 = sbr.rel (0) target = $region25
    $region24: #{tpu_custom_call.1} parent=1 // pred_region
      %71 = dma.done [#allocation4], 256
    $region25: #{tpu_custom_call.1} parent=1 // pred_fallthru
      _
    %72 = vsyncpa [#allocation3], 1
    %73 = vsyncpa [#allocation4], 1
    %74 = vsyncpa [#allocation5], 1

</llo_original>
